<compile_context>
chip_gen: v6e
topology: v6e:2x2x1
jax: 0.10.0
libtpu: 0.0.40
codegen_flags: <defaults>
</compile_context>

<pallas_src>
import functools

import jax
import jax.numpy as jnp
from jax.experimental import pallas as pl
from jax.experimental.pallas import tpu as pltpu

K = 7            # Conv3d kernel size from the module
PAD = K // 2     # "same" padding


def _spatial_attention_kernel(x_ref, wb_ref, o_ref,
                              sum_ref, max_ref, pad_ref, *, D, HW):
    # x_ref  : (1, Ct, D, HW)          one channel-tile of one batch element
    # wb_ref : (K, 2*HW, HW)  bf16     per-kd band weights (kh/kw + H/W pad folded)
    # o_ref  : (1, 1, D, HW)           sigmoid(conv) output (lane dense)
    # sum_ref/max_ref : (D, HW) f32    running channel sum / max
    # pad_ref: (D + 2*PAD, 2*HW) f32   D-padded [sum | max] slab
    c = pl.program_id(1)
    nc = pl.num_programs(1)

    x = x_ref[0].astype(jnp.float32)                      # (Ct, D, HW)

    @pl.when(c == 0)
    def _init():
        sum_ref[...] = jnp.zeros_like(sum_ref)
        max_ref[...] = jnp.full_like(max_ref, -jnp.inf)

    sum_ref[...] = sum_ref[...] + jnp.sum(x, axis=0)
    max_ref[...] = jnp.maximum(max_ref[...], jnp.max(x, axis=0))

    @pl.when(c == nc - 1)
    def _conv_and_store():
        # [sum | max] along lanes; the 1/C mean scale is already folded into the
        # avg-channel rows of wb, so a plain channel sum is correct.
        cat = jnp.concatenate([sum_ref[...], max_ref[...]], axis=-1)   # (D, 2*HW)
        # Zero only the D-padding border; interior is overwritten every time.
        pad_ref[:PAD, :] = jnp.zeros((PAD, 2 * HW), jnp.float32)
        pad_ref[PAD + D:, :] = jnp.zeros((PAD, 2 * HW), jnp.float32)
        pad_ref[PAD:PAD + D, :] = cat

        acc = jnp.zeros((D, HW), jnp.float32)
        for kd in range(K):                                            # 7 MXU taps
            slab = pad_ref[kd:kd + D, :].astype(jnp.bfloat16)          # (D, 2*HW)
            acc = acc + jnp.dot(slab, wb_ref[kd],
                                preferred_element_type=jnp.float32)
        o_ref[0, 0] = jax.nn.sigmoid(acc).astype(o_ref.dtype)


def _make_band_weights(weight, C, H, W):
    # weight: (1, 2, K, K, K) Conv3d kernel, axes (O=1, I=2, kd, kh, kw).
    # Build per-kd matrices B[kd] of shape (2*H*W, H*W) with
    #   B[kd][c*H*W + ih*W + iw, oh*W + ow] = w[c, kd, ih-oh+PAD, iw-ow+PAD]
    # zeroed where the tap falls outside the kernel (implicit H/W zero padding),
    # and the 1/C mean scale folded into the avg channel (c = 0).
    # Note: for very large H*W this band matrix gets sparse; switch kh/kw to
    # pltpu.roll-style shifted taps in that regime.
    w = weight[0].astype(jnp.float32)                                  # (2, K, K, K)
    w = w * jnp.array([1.0 / C, 1.0], jnp.float32)[:, None, None, None]

    ih = jnp.arange(H); oh = jnp.arange(H)
    iw = jnp.arange(W); ow = jnp.arange(W)
    kh = ih[:, None] - oh[None, :] + PAD                               # (H_in, H_out)
    kw = iw[:, None] - ow[None, :] + PAD                               # (W_in, W_out)
    vh = (kh >= 0) & (kh < K)
    vw = (kw >= 0) & (kw < K)
    kh_s = jnp.clip(kh, 0, K - 1)
    kw_s = jnp.clip(kw, 0, K - 1)

    band = w[:, :, kh_s][..., kw_s]                     # (c, kd, ih, oh, iw, ow)
    mask = vh[:, :, None, None] & vw[None, None, :, :]  # (ih, oh, iw, ow)
    band = jnp.where(mask[None, None], band, 0.0)
    band = jnp.transpose(band, (1, 0, 2, 4, 3, 5))      # (kd, c, ih, iw, oh, ow)
    wb = band.reshape(K, 2 * H * W, H * W)
    return wb.astype(jnp.bfloat16)                      # bf16 MXU operands


def _pick_channel_tile(C, N, D, HW, itemsize, budget_bytes=4 << 20, min_steps=8):
    # Largest divisor of C whose (1, Ct, D, HW) block fits the per-buffer budget
    # (input is double-buffered -> keeps v7x's 64 MiB VMEM safe), then shrink so
    # the grid has at least `min_steps` steps for pipelining / megacore sharding.
    divisors = [d for d in range(1, C + 1) if C % d == 0]
    fitting = [d for d in divisors if d * D * HW * itemsize <= budget_bytes] or [1]
    ct = max(fitting)
    while ct > 1 and N * (C // ct) < min_steps:
        smaller = [d for d in fitting if d < ct]
        if not smaller:
            break
        ct = max(smaller)
    return ct


def spatial_attention(x, weight):
    # x: (N, C, D, H, W); weight: (1, 2, K, K, K).  Returns (N, 1, D, H, W).
    N, C, D, H, W = x.shape
    HW = H * W
    wb = _make_band_weights(weight, C, H, W)
    x2 = x.reshape(N, C, D, HW)                     # lane-dense input (free reshape)

    ct = _pick_channel_tile(C, N, D, HW, x.dtype.itemsize)
    nc = C // ct

    kernel = functools.partial(_spatial_attention_kernel, D=D, HW=HW)
    out = pl.pallas_call(
        kernel,
        out_shape=jax.ShapeDtypeStruct((N, 1, D, HW), x.dtype),
        grid_spec=pltpu.PrefetchScalarGridSpec(
            num_scalar_prefetch=0,
            grid=(N, nc),                           # channel-reduction axis last
            in_specs=[
                pl.BlockSpec((1, ct, D, HW), lambda n, c: (n, c, 0, 0)),
                pl.BlockSpec((K, 2 * HW, HW), lambda n, c: (0, 0, 0)),
            ],
            out_specs=pl.BlockSpec((1, 1, D, HW), lambda n, c: (n, 0, 0, 0)),
            scratch_shapes=[
                pltpu.VMEM((D, HW), jnp.float32),                 # channel sum
                pltpu.VMEM((D, HW), jnp.float32),                 # channel max
                pltpu.VMEM((D + 2 * PAD, 2 * HW), jnp.float32),   # D-padded slab
            ],
        ),
        compiler_params=pltpu.CompilerParams(
            dimension_semantics=("parallel", "arbitrary"),
            vmem_limit_bytes=32 * 1024 * 1024),
    )(x2, wb)
    return out.reshape(N, 1, D, H, W)


def spatial_attention_ref(x, weight):
    # Pure-JAX reference of the PyTorch forward (f32 throughout).
    avg = jnp.mean(x, axis=1, keepdims=True)
    mx = jnp.max(x, axis=1, keepdims=True)
    cat = jnp.concatenate([avg, mx], axis=1)
    y = jax.lax.conv_general_dilated(
        cat, weight, window_strides=(1, 1, 1),
        padding=[(PAD, PAD)] * 3,
        dimension_numbers=("NCDHW", "OIDHW", "NCDHW"))
    return jax.nn.sigmoid(y)


if __name__ == "__main__":
    key = jax.random.PRNGKey(0)
    kx, kw = jax.random.split(key)

    N, C, D, H, W = 2, 4, 8, 8, 8
    x = jax.random.normal(kx, (N, C, D, H, W), dtype=jnp.float32)
    # Deterministic synthetic init for Conv3d(2, 1, 7, bias=False) -> (1, 2, 7, 7, 7)
    weight = 0.05 * jax.random.normal(kw, (1, 2, K, K, K), dtype=jnp.float32)

    out = jax.block_until_ready(spatial_attention(x, weight))

    ref = spatial_attention_ref(x, weight)
    assert out.shape == (N, 1, D, H, W), out.shape
    # bf16 MXU operands (f32 accumulate) -> slightly looser tolerance than pure f32.
    assert jnp.allclose(out, ref, atol=1e-2, rtol=1e-2), float(
        jnp.max(jnp.abs(out - ref)))
    print("KERNEL_OK")
</pallas_src>

<mosaic_0001>
module attributes {stable_mosaic.version = 11 : i64} {
  func.func @_spatial_attention_kernel(%arg0: i32, %arg1: i32, %arg2: memref<1x1x8x64xf32, #tpu.memory_space<vmem>>, %arg3: memref<7x128x64xbf16, #tpu.memory_space<vmem>>, %arg4: memref<1x1x8x64xf32, #tpu.memory_space<vmem>>, %arg5: memref<8x64xf32, #tpu.memory_space<vmem>>, %arg6: memref<8x64xf32, #tpu.memory_space<vmem>>, %arg7: memref<14x128xf32, #tpu.memory_space<vmem>>) attributes {dimension_semantics = [#tpu.dimension_semantics<parallel>, #tpu.dimension_semantics<arbitrary>], iteration_bounds = array<i64: 2, 4>, scalar_prefetch = 0 : i64, scratch_operands = 3 : i64, tpu.core_type = #tpu.core_type<tc>, window_params = [{transform_indices = @transform_0, window_bounds = array<i64: 1, 1, 8, 64>}, {pipeline_mode = #tpu.pipeline_mode<synchronous>, transform_indices = @transform_1, window_bounds = array<i64: 7, 128, 64>}, {transform_indices = @transform_2, window_bounds = array<i64: 1, 1, 8, 64>}]} {
    %c0 = arith.constant 0 : index
    %c0_0 = arith.constant 0 : index
    %c0_1 = arith.constant 0 : index
    %c0_2 = arith.constant 0 : index
    %0 = vector.load %arg2[%c0, %c0_0, %c0_1, %c0_2] : memref<1x1x8x64xf32, #tpu.memory_space<vmem>>, vector<1x1x8x64xf32>
    %1 = vector.shape_cast %0 : vector<1x1x8x64xf32> to vector<1x8x64xf32>
    %c0_i32 = arith.constant 0 : i32
    %2 = arith.cmpi eq, %arg1, %c0_i32 : i32
    %3 = arith.extui %2 : i1 to i32
    %c0_i32_3 = arith.constant 0 : i32
    %4 = arith.cmpi ne, %3, %c0_i32_3 : i32
    scf.if %4 {
      %cst_14 = arith.constant 0.000000e+00 : f32
      %16 = vector.broadcast %cst_14 : f32 to vector<8x64xf32>
      %c0_15 = arith.constant 0 : index
      %c0_16 = arith.constant 0 : index
      %17 = vector.load %arg5[%c0_15, %c0_16] : memref<8x64xf32, #tpu.memory_space<vmem>>, vector<8x64xf32>
      tpu.vector_store %arg5[%c0_15, %c0_16], %16 {strides = array<i32>} : memref<8x64xf32, #tpu.memory_space<vmem>>, vector<8x64xf32>,
      %cst_17 = arith.constant 0xFF800000 : f32
      %18 = vector.broadcast %cst_17 : f32 to vector<8x64xf32>
      %c0_18 = arith.constant 0 : index
      %c0_19 = arith.constant 0 : index
      %19 = vector.load %arg6[%c0_18, %c0_19] : memref<8x64xf32, #tpu.memory_space<vmem>>, vector<8x64xf32>
      tpu.vector_store %arg6[%c0_18, %c0_19], %18 {strides = array<i32>} : memref<8x64xf32, #tpu.memory_space<vmem>>, vector<8x64xf32>,
    } else {
    }
    %c0_4 = arith.constant 0 : index
    %c0_5 = arith.constant 0 : index
    %5 = vector.load %arg5[%c0_4, %c0_5] : memref<8x64xf32, #tpu.memory_space<vmem>>, vector<8x64xf32>
    %cst = arith.constant dense<0.000000e+00> : vector<8x64xf32>
    %6 = vector.multi_reduction <add>, %1, %cst [0] : vector<1x8x64xf32> to vector<8x64xf32>
    %7 = arith.addf %5, %6 : vector<8x64xf32>
    %c0_6 = arith.constant 0 : index
    %c0_7 = arith.constant 0 : index
    %8 = vector.load %arg5[%c0_6, %c0_7] : memref<8x64xf32, #tpu.memory_space<vmem>>, vector<8x64xf32>
    tpu.vector_store %arg5[%c0_6, %c0_7], %7 {strides = array<i32>} : memref<8x64xf32, #tpu.memory_space<vmem>>, vector<8x64xf32>,
    %c0_8 = arith.constant 0 : index
    %c0_9 = arith.constant 0 : index
    %9 = vector.load %arg6[%c0_8, %c0_9] : memref<8x64xf32, #tpu.memory_space<vmem>>, vector<8x64xf32>
    %cst_10 = arith.constant dense<0xFF800000> : vector<8x64xf32>
    %10 = vector.multi_reduction <maximumf>, %1, %cst_10 [0] : vector<1x8x64xf32> to vector<8x64xf32>
    %11 = arith.maximumf %9, %10 : vector<8x64xf32>
    %c0_11 = arith.constant 0 : index
    %c0_12 = arith.constant 0 : index
    %12 = vector.load %arg6[%c0_11, %c0_12] : memref<8x64xf32, #tpu.memory_space<vmem>>, vector<8x64xf32>
    tpu.vector_store %arg6[%c0_11, %c0_12], %11 {strides = array<i32>} : memref<8x64xf32, #tpu.memory_space<vmem>>, vector<8x64xf32>,
    %c3_i32 = arith.constant 3 : i32
    %13 = arith.cmpi eq, %arg1, %c3_i32 : i32
    %14 = arith.extui %13 : i1 to i32
    %c0_i32_13 = arith.constant 0 : i32
    %15 = arith.cmpi ne, %14, %c0_i32_13 : i32
    scf.if %15 {
      %c0_14 = arith.constant 0 : index
      %c0_15 = arith.constant 0 : index
      %16 = vector.load %arg5[%c0_14, %c0_15] : memref<8x64xf32, #tpu.memory_space<vmem>>, vector<8x64xf32>
      %c0_16 = arith.constant 0 : index
      %c0_17 = arith.constant 0 : index
      %17 = vector.load %arg6[%c0_16, %c0_17] : memref<8x64xf32, #tpu.memory_space<vmem>>, vector<8x64xf32>
      %18 = tpu.concatenate %16, %17 in 1 : vector<8x64xf32>, vector<8x64xf32> -> vector<8x128xf32>
      %cst_18 = arith.constant 0.000000e+00 : f32
      %19 = vector.broadcast %cst_18 : f32 to vector<3x128xf32>
      %c0_19 = arith.constant 0 : index
      %c0_20 = arith.constant 0 : index
      %20 = vector.load %arg7[%c0_19, %c0_20] : memref<14x128xf32, #tpu.memory_space<vmem>>, vector<3x128xf32>
      tpu.vector_store %arg7[%c0_19, %c0_20], %19 {strides = array<i32>} : memref<14x128xf32, #tpu.memory_space<vmem>>, vector<3x128xf32>,
      %cst_21 = arith.constant 0.000000e+00 : f32
      %21 = vector.broadcast %cst_21 : f32 to vector<3x128xf32>
      %c11 = arith.constant 11 : index
      %c0_22 = arith.constant 0 : index
      %22 = vector.load %arg7[%c11, %c0_22] : memref<14x128xf32, #tpu.memory_space<vmem>>, vector<3x128xf32>
      tpu.vector_store %arg7[%c11, %c0_22], %21 {strides = array<i32>} : memref<14x128xf32, #tpu.memory_space<vmem>>, vector<3x128xf32>,
      %c3 = arith.constant 3 : index
      %c0_23 = arith.constant 0 : index
      %23 = vector.load %arg7[%c3, %c0_23] : memref<14x128xf32, #tpu.memory_space<vmem>>, vector<8x128xf32>
      tpu.vector_store %arg7[%c3, %c0_23], %18 {strides = array<i32>} : memref<14x128xf32, #tpu.memory_space<vmem>>, vector<8x128xf32>,
      %cst_24 = arith.constant 0.000000e+00 : f32
      %24 = vector.broadcast %cst_24 : f32 to vector<8x64xf32>
      %c0_25 = arith.constant 0 : index
      %c0_26 = arith.constant 0 : index
      %25 = vector.load %arg7[%c0_25, %c0_26] : memref<14x128xf32, #tpu.memory_space<vmem>>, vector<8x128xf32>
      %26 = arith.truncf %25 : vector<8x128xf32> to vector<8x128xbf16>
      %c0_27 = arith.constant 0 : index
      %c0_28 = arith.constant 0 : index
      %c0_29 = arith.constant 0 : index
      %27 = vector.load %arg3[%c0_27, %c0_28, %c0_29] : memref<7x128x64xbf16, #tpu.memory_space<vmem>>, vector<1x128x64xbf16>
      %28 = vector.shape_cast %27 : vector<1x128x64xbf16> to vector<128x64xbf16>
      %cst_30 = arith.constant dense<0.000000e+00> : vector<8x64xf32>
      %29 = tpu.matmul %26, %28, %cst_30 {dimension_numbers = #tpu.dot_dimension_numbers<[1], [0], [0], [1], [0, 0, 1, 1], [], []>} : vector<8x128xbf16>, vector<128x64xbf16>, vector<8x64xf32> -> vector<8x64xf32>
      %30 = arith.addf %24, %29 : vector<8x64xf32>
      %c1 = arith.constant 1 : index
      %c0_31 = arith.constant 0 : index
      %31 = vector.load %arg7[%c1, %c0_31] : memref<14x128xf32, #tpu.memory_space<vmem>>, vector<8x128xf32>
      %32 = arith.truncf %31 : vector<8x128xf32> to vector<8x128xbf16>
      %c1_32 = arith.constant 1 : index
      %c0_33 = arith.constant 0 : index
      %c0_34 = arith.constant 0 : index
      %33 = vector.load %arg3[%c1_32, %c0_33, %c0_34] : memref<7x128x64xbf16, #tpu.memory_space<vmem>>, vector<1x128x64xbf16>
      %34 = vector.shape_cast %33 : vector<1x128x64xbf16> to vector<128x64xbf16>
      %cst_35 = arith.constant dense<0.000000e+00> : vector<8x64xf32>
      %35 = tpu.matmul %32, %34, %cst_35 {dimension_numbers = #tpu.dot_dimension_numbers<[1], [0], [0], [1], [0, 0, 1, 1], [], []>} : vector<8x128xbf16>, vector<128x64xbf16>, vector<8x64xf32> -> vector<8x64xf32>
      %36 = arith.addf %30, %35 : vector<8x64xf32>
      %c2 = arith.constant 2 : index
      %c0_36 = arith.constant 0 : index
      %37 = vector.load %arg7[%c2, %c0_36] : memref<14x128xf32, #tpu.memory_space<vmem>>, vector<8x128xf32>
      %38 = arith.truncf %37 : vector<8x128xf32> to vector<8x128xbf16>
      %c2_37 = arith.constant 2 : index
      %c0_38 = arith.constant 0 : index
      %c0_39 = arith.constant 0 : index
      %39 = vector.load %arg3[%c2_37, %c0_38, %c0_39] : memref<7x128x64xbf16, #tpu.memory_space<vmem>>, vector<1x128x64xbf16>
      %40 = vector.shape_cast %39 : vector<1x128x64xbf16> to vector<128x64xbf16>
      %cst_40 = arith.constant dense<0.000000e+00> : vector<8x64xf32>
      %41 = tpu.matmul %38, %40, %cst_40 {dimension_numbers = #tpu.dot_dimension_numbers<[1], [0], [0], [1], [0, 0, 1, 1], [], []>} : vector<8x128xbf16>, vector<128x64xbf16>, vector<8x64xf32> -> vector<8x64xf32>
      %42 = arith.addf %36, %41 : vector<8x64xf32>
      %c3_41 = arith.constant 3 : index
      %c0_42 = arith.constant 0 : index
      %43 = vector.load %arg7[%c3_41, %c0_42] : memref<14x128xf32, #tpu.memory_space<vmem>>, vector<8x128xf32>
      %44 = arith.truncf %43 : vector<8x128xf32> to vector<8x128xbf16>
      %c3_43 = arith.constant 3 : index
      %c0_44 = arith.constant 0 : index
      %c0_45 = arith.constant 0 : index
      %45 = vector.load %arg3[%c3_43, %c0_44, %c0_45] : memref<7x128x64xbf16, #tpu.memory_space<vmem>>, vector<1x128x64xbf16>
      %46 = vector.shape_cast %45 : vector<1x128x64xbf16> to vector<128x64xbf16>
      %cst_46 = arith.constant dense<0.000000e+00> : vector<8x64xf32>
      %47 = tpu.matmul %44, %46, %cst_46 {dimension_numbers = #tpu.dot_dimension_numbers<[1], [0], [0], [1], [0, 0, 1, 1], [], []>} : vector<8x128xbf16>, vector<128x64xbf16>, vector<8x64xf32> -> vector<8x64xf32>
      %48 = arith.addf %42, %47 : vector<8x64xf32>
      %c4 = arith.constant 4 : index
      %c0_47 = arith.constant 0 : index
      %49 = vector.load %arg7[%c4, %c0_47] : memref<14x128xf32, #tpu.memory_space<vmem>>, vector<8x128xf32>
      %50 = arith.truncf %49 : vector<8x128xf32> to vector<8x128xbf16>
      %c4_48 = arith.constant 4 : index
      %c0_49 = arith.constant 0 : index
      %c0_50 = arith.constant 0 : index
      %51 = vector.load %arg3[%c4_48, %c0_49, %c0_50] : memref<7x128x64xbf16, #tpu.memory_space<vmem>>, vector<1x128x64xbf16>
      %52 = vector.shape_cast %51 : vector<1x128x64xbf16> to vector<128x64xbf16>
      %cst_51 = arith.constant dense<0.000000e+00> : vector<8x64xf32>
      %53 = tpu.matmul %50, %52, %cst_51 {dimension_numbers = #tpu.dot_dimension_numbers<[1], [0], [0], [1], [0, 0, 1, 1], [], []>} : vector<8x128xbf16>, vector<128x64xbf16>, vector<8x64xf32> -> vector<8x64xf32>
      %54 = arith.addf %48, %53 : vector<8x64xf32>
      %c5 = arith.constant 5 : index
      %c0_52 = arith.constant 0 : index
      %55 = vector.load %arg7[%c5, %c0_52] : memref<14x128xf32, #tpu.memory_space<vmem>>, vector<8x128xf32>
      %56 = arith.truncf %55 : vector<8x128xf32> to vector<8x128xbf16>
      %c5_53 = arith.constant 5 : index
      %c0_54 = arith.constant 0 : index
      %c0_55 = arith.constant 0 : index
      %57 = vector.load %arg3[%c5_53, %c0_54, %c0_55] : memref<7x128x64xbf16, #tpu.memory_space<vmem>>, vector<1x128x64xbf16>
      %58 = vector.shape_cast %57 : vector<1x128x64xbf16> to vector<128x64xbf16>
      %cst_56 = arith.constant dense<0.000000e+00> : vector<8x64xf32>
      %59 = tpu.matmul %56, %58, %cst_56 {dimension_numbers = #tpu.dot_dimension_numbers<[1], [0], [0], [1], [0, 0, 1, 1], [], []>} : vector<8x128xbf16>, vector<128x64xbf16>, vector<8x64xf32> -> vector<8x64xf32>
      %60 = arith.addf %54, %59 : vector<8x64xf32>
      %c6 = arith.constant 6 : index
      %c0_57 = arith.constant 0 : index
      %61 = vector.load %arg7[%c6, %c0_57] : memref<14x128xf32, #tpu.memory_space<vmem>>, vector<8x128xf32>
      %62 = arith.truncf %61 : vector<8x128xf32> to vector<8x128xbf16>
      %c6_58 = arith.constant 6 : index
      %c0_59 = arith.constant 0 : index
      %c0_60 = arith.constant 0 : index
      %63 = vector.load %arg3[%c6_58, %c0_59, %c0_60] : memref<7x128x64xbf16, #tpu.memory_space<vmem>>, vector<1x128x64xbf16>
      %64 = vector.shape_cast %63 : vector<1x128x64xbf16> to vector<128x64xbf16>
      %cst_61 = arith.constant dense<0.000000e+00> : vector<8x64xf32>
      %65 = tpu.matmul %62, %64, %cst_61 {dimension_numbers = #tpu.dot_dimension_numbers<[1], [0], [0], [1], [0, 0, 1, 1], [], []>} : vector<8x128xbf16>, vector<128x64xbf16>, vector<8x64xf32> -> vector<8x64xf32>
      %66 = arith.addf %60, %65 : vector<8x64xf32>
      %67 = arith.negf %66 : vector<8x64xf32>
      %68 = math.exp %67 : vector<8x64xf32>
      %cst_62 = arith.constant 1.000000e+00 : f32
      %69 = vector.broadcast %cst_62 : f32 to vector<8x64xf32>
      %70 = arith.addf %69, %68 : vector<8x64xf32>
      %71 = arith.divf %69, %70 : vector<8x64xf32>
      %c0_63 = arith.constant 0 : index
      %c0_64 = arith.constant 0 : index
      %c0_65 = arith.constant 0 : index
      %c0_66 = arith.constant 0 : index
      %72 = vector.load %arg4[%c0_63, %c0_64, %c0_65, %c0_66] : memref<1x1x8x64xf32, #tpu.memory_space<vmem>>, vector<1x1x8x64xf32>
      %73 = vector.shape_cast %72 : vector<1x1x8x64xf32> to vector<8x64xf32>
      %74 = vector.shape_cast %71 : vector<8x64xf32> to vector<1x1x8x64xf32>
      tpu.vector_store %arg4[%c0_63, %c0_64, %c0_65, %c0_66], %74 {strides = array<i32>} : memref<1x1x8x64xf32, #tpu.memory_space<vmem>>, vector<1x1x8x64xf32>,
    } else {
    }
    return
  }
  func.func @transform_0(%arg0: i32, %arg1: i32) -> (i32, i32, i32, i32) {
    %c0_i32 = arith.constant 0 : i32
    %c0_i32_0 = arith.constant 0 : i32
    %c0_i32_1 = arith.constant 0 : i32
    return %arg0, %arg1, %c0_i32, %c0_i32_0 : i32, i32, i32, i32
  }
  func.func @transform_1(%arg0: i32, %arg1: i32) -> (i32, i32, i32) {
    %c0_i32 = arith.constant 0 : i32
    %c0_i32_0 = arith.constant 0 : i32
    %c0_i32_1 = arith.constant 0 : i32
    %c0_i32_2 = arith.constant 0 : i32
    return %c0_i32, %c0_i32_0, %c0_i32_1 : i32, i32, i32
  }
  func.func @transform_2(%arg0: i32, %arg1: i32) -> (i32, i32, i32, i32) {
    %c0_i32 = arith.constant 0 : i32
    %c0_i32_0 = arith.constant 0 : i32
    %c0_i32_1 = arith.constant 0 : i32
    %c0_i32_2 = arith.constant 0 : i32
    return %arg0, %c0_i32, %c0_i32_0, %c0_i32_1 : i32, i32, i32, i32
  }
}

</mosaic_0001>

<llo_original>
// kernel: tpu_custom_call.1
$region0: #{tpu_custom_call.1}
  #allocation0 [shape = 'u32[]', space=smem, size = 0x4, offset = 0x4, fixed_abs, tag = 'smem constant byte address 0x4 - core index']
  #allocation1 [shape = 'u32[144,128]{1,0:T(1,128)}', space=vmem, size = 0x12000, scoped, tag = 'internal scratch']
  #allocation2 [shape = 'f32[8,64]{1,0:T(8,128)}', space=vmem, size = 0x1000, scoped, tag = 'scratch operand']
  #allocation3 [shape = 'f32[8,64]{1,0:T(8,128)}', space=vmem, size = 0x1000, scoped, tag = 'scratch operand']
  #allocation4 [shape = 'f32[14,128]{1,0:T(8,128)}', space=vmem, size = 0x2000, scoped, tag = 'scratch operand']
  %s0 = inlined_call_operand.vmem [shape: f32[2,4,8,64], index: 0, kind: input, shape index: {}]
  %s1 = inlined_call_operand.vmem [shape: bf16[7,128,64], index: 1, kind: input, shape index: {}]
  %s2 = inlined_call_operand.hbm [shape: f32[2,1,8,64], index: 2, kind: output, shape index: {}]
  %s3 = sld [smem:[#allocation0]]
  $region49: #{tpu_custom_call.1} parent=0
    _
  %s5 = ssub.s32 1, %s3
  %s6 = scalar_select 0, %s5, %s3
  $region1: #{tpu_custom_call.1} parent=0
    #allocation5 [shape = 'u8[8192]{0}', space=vmem, size = 0x2000, scoped, tag = 'output window, operand 0']
    #allocation6 [shape = 's32[2]{0}', space=sflag, size = 0x8, scoped, tag = 'scoped memory for tpu_custom_call.1']
    %7 = vsyncpa [#allocation6], 0
    %s8 = scalar_lea.sflag [#allocation6], 1
    %9 = vsyncpa %s8, 0
    loop: start=0, step=1, limit=10
    $region2: #{tpu_custom_call.1} parent=1 // loop_pre_header
      _
    $region3: #{tpu_custom_call.1} parent=1 // loop_header
      %s11 = sphi 0, %s15
      %p12 = scmp.ge.s32.totalorder %s11, 10
      %s18 = sphi 0, %s30
      %s19 = sphi 0, %s26
      %s20 = sphi 0, %s18
      %s21 = sphi 0, %s19
      %s22 = sphi 0, %s20
      %s23 = sphi 0, %s21
      %s35 = sphi 0, %s37
      %s38 = sphi 0, %s35
      %s39 = sphi 0, %s38
      %s55 = sphi 0, %s39
      %s59 = sphi 0, %s59
      %s61 = sphi 0, %s59
      %s62 = sphi 0, %s61
      %s76 = sphi 0, %s62
      %s82 = sphi 0, %s84
      %s85 = sphi 0, %s82
      %s86 = sphi 0, %s85
      %s102 = sphi 0, %s86
    $region4: #{tpu_custom_call.1} parent=1 // loop_header_branch
      %14 = sbr.rel (%p12) target = $region8
    $region5: #{tpu_custom_call.1} parent=1 // loop_body
      %s16 = ssub.s32 %s11, 1
      %s17 = ssub.s32 %s11, 2
      %s24 = sadd.s32 1, %s19
      %p25 = scmp.ge.s32.totalorder %s24, 4
      %s26 = scalar_select %p25, 0, %s24
      %s27 = sadd.s32 1, %s18
      %s28 = scalar_select %p25, %s27, %s18
      %p29 = scmp.ge.s32.totalorder %s28, 2
      %s30 = scalar_select %p29, 0, %s28
      %s31 = ssub.s32 %s18, %s30
      %s32 = ssub.s32 %s19, %s26
      %s33 = sor.u32 %s31, %s32
      %p34 = scmp.eq.s32.totalorder %s33, 0
      %s36 = sadd.s32 %s35, 1
      %s37 = scalar_select %p34, %s35, %s36
      %p40 = pneg %p34
      %p41 = scmp.eq.s32.totalorder %s11, 7
      %p42 = por %p40, %p41
      %p43 = scmp.ne.s32.totalorder %s35, %s38
      %p44 = scmp.eq.s32.totalorder %s11, 0
      %p45 = por %p43, %p44
      %p46 = scmp.ne.s32.totalorder %s35, %s38
      %p47 = scmp.eq.s32.totalorder %s16, 7
      %p48 = por %p46, %p47
      %p49 = scmp.ne.s32.totalorder %s38, %s39
      %p50 = scmp.eq.s32.totalorder %s16, 0
      %p51 = por %p49, %p50
      %p52 = scmp.ne.s32.totalorder %s38, %s39
      %p53 = scmp.eq.s32.totalorder %s17, 7
      %p54 = por %p52, %p53
      %p56 = scmp.ne.s32.totalorder %s39, %s55
      %p57 = scmp.eq.s32.totalorder %s17, 0
      %p58 = por %p56, %p57
      %s60 = sadd.s32 %s59, 1
      %p63 = scmp.eq.s32.totalorder %s11, 7
      %p64 = scmp.ne.s32.totalorder %s59, %s61
      %p65 = scmp.eq.s32.totalorder %s11, 0
      %p66 = por %p64, %p65
      %p67 = scmp.ne.s32.totalorder %s59, %s61
      %p68 = scmp.eq.s32.totalorder %s16, 7
      %p69 = por %p67, %p68
      %p70 = scmp.ne.s32.totalorder %s61, %s62
      %p71 = scmp.eq.s32.totalorder %s16, 0
      %p72 = por %p70, %p71
      %p73 = scmp.ne.s32.totalorder %s61, %s62
      %p74 = scmp.eq.s32.totalorder %s17, 7
      %p75 = por %p73, %p74
      %p77 = scmp.ne.s32.totalorder %s62, %s76
      %p78 = scmp.eq.s32.totalorder %s17, 0
      %p79 = por %p77, %p78
      %s80 = ssub.s32 %s18, %s30
      %p81 = scmp.eq.s32.totalorder %s80, 0
      %s83 = sadd.s32 %s82, 1
      %s84 = scalar_select %p81, %s82, %s83
      %p87 = pneg %p81
      %p88 = scmp.eq.s32.totalorder %s11, 7
      %p89 = por %p87, %p88
      %p90 = scmp.ne.s32.totalorder %s82, %s85
      %p91 = scmp.eq.s32.totalorder %s11, 0
      %p92 = por %p90, %p91
      %p93 = scmp.ne.s32.totalorder %s82, %s85
      %p94 = scmp.eq.s32.totalorder %s16, 7
      %p95 = por %p93, %p94
      %p96 = scmp.ne.s32.totalorder %s85, %s86
      %p97 = scmp.eq.s32.totalorder %s16, 0
      %p98 = por %p96, %p97
      %p99 = scmp.ne.s32.totalorder %s85, %s86
      %p100 = scmp.eq.s32.totalorder %s17, 7
      %p101 = por %p99, %p100
      %p103 = scmp.ne.s32.totalorder %s86, %s102
      %p104 = scmp.eq.s32.totalorder %s17, 0
      %p105 = por %p103, %p104
      %p106 = scmp.le.s32.totalorder 1, %s11
      %p107 = scmp.lt.s32.totalorder %s11, 9
      %p108 = pnand %p106, %p107
      %p109 = pneg %p108
      // Predicated region
      $region9: #{tpu_custom_call.1} parent=5 // pred_check
        _
      $region10: #{tpu_custom_call.1} parent=5 // pred_check_branch
        %111 = sbr.rel (%p108) target = $region12
      $region11: #{tpu_custom_call.1} parent=5 // pred_region
        %s112 = ssub.s32 %s11, 1
        // Predicated region
        $region13: #{tpu_custom_call.1} parent=11 // pred_check
          %p113 = pneg %p72
        $region14: #{tpu_custom_call.1} parent=11 // pred_check_branch
          %115 = sbr.rel (%p113) target = $region16
        $region15: #{tpu_custom_call.1} parent=11 // pred_region
          _
        $region16: #{tpu_custom_call.1} parent=11 // pred_fallthru
          _
      $region12: #{tpu_custom_call.1} parent=5 // pred_fallthru
        _
      %p116 = scmp.lt.s32.totalorder %s11, 8
      // Predicated region
      $region17: #{tpu_custom_call.1} parent=5 // pred_check
        %p117 = pneg %p116
      $region18: #{tpu_custom_call.1} parent=5 // pred_check_branch
        %119 = sbr.rel (%p117) target = $region20
      $region19: #{tpu_custom_call.1} parent=5 // pred_region
        // Predicated region
        $region21: #{tpu_custom_call.1} parent=19 // pred_check
          %p120 = pneg %p45
        $region22: #{tpu_custom_call.1} parent=19 // pred_check_branch
          %122 = sbr.rel (%p120) target = $region24
        $region23: #{tpu_custom_call.1} parent=19 // pred_region
          %p123 = scmp.lt.s32.totalorder %s18, 1
          %s124 = scalar_select %p123, %s18, 1
          %p125 = scmp.lt.s32.totalorder %s19, 3
          %s126 = scalar_select %p125, %s19, 3
          %s127 = smul.addr %s124, 4
          %s128 = sadd.s32 %s126, %s127
          %s129 = smul.addr %s128, 8
          %s130 = scalar_lea.vmem %s0, %s129
        $region24: #{tpu_custom_call.1} parent=19 // pred_fallthru
          _
      $region20: #{tpu_custom_call.1} parent=5 // pred_fallthru
        _
      %p131 = scmp.le.s32.totalorder 1, %s11
      %p132 = scmp.lt.s32.totalorder %s11, 9
      %p133 = pnand %p131, %p132
      %p134 = pneg %p133
      // Predicated region
      $region25: #{tpu_custom_call.1} parent=5 // pred_check
        _
      $region26: #{tpu_custom_call.1} parent=5 // pred_check_branch
        %136 = sbr.rel (%p133) target = $region28
      $region27: #{tpu_custom_call.1} parent=5 // pred_region
        %s137 = ssub.s32 %s11, 1
        %p138 = scmp.lt.s32.totalorder %s20, 1
        %s139 = scalar_select %p138, %s20, 1
        %p140 = scmp.lt.s32.totalorder %s21, 3
        %s141 = scalar_select %p140, %s21, 3
        %s142 = smul.addr %s139, 4
        %s143 = sadd.s32 %s141, %s142
        %s144 = smul.addr %s143, 8
        %s145 = scalar_lea.vmem %s0, %s144
        %p146 = pneg %p51
        %p147 = pneg %p48
        %p148 = pneg %p72
        %p149 = pneg %p69
        %p150 = pneg %p98
        %p151 = pneg %p95
        %s152 = sand.u32 %s85, 1
        %s153 = scalar_lea.sflag [#allocation6], %s152
        %s154 = sand.u32 %s85, 1
        %s155 = smul.addr %s154, 8
        %s156 = scalar_lea.vmem [#allocation5], %s155
        %p157 = scmp.lt.s32.totalorder %s20, 1
        %s158 = scalar_select %p157, %s20, 1
        %p159 = scmp.lt.s32.totalorder %s21, 3
        %s160 = scalar_select %p159, %s21, 3
        %s161 = smul.addr %s158, 4
        %s162 = sadd.s32 %s160, %s161
        %s163 = smul.addr %s162, 8
        %s164 = scalar_lea.vmem %s0, %s163
        %v166 = vld [vmem:[%s164] sm:$0xff]
        %p167 = scmp.eq.s32.totalorder %s21, 0
        // Predicated region
        $region29: #{tpu_custom_call.1} parent=27 // pred_check
          %p168 = pneg %p167
        $region30: #{tpu_custom_call.1} parent=27 // pred_check_branch
          %170 = sbr.rel (%p168) target = $region32
        $region31: #{tpu_custom_call.1} parent=27 // pred_region
          %vm171 = vcmask 523264
          %172 = vst.msk [vmem:[#allocation2] sm:$0xff] %vm171, 0.0
          %173 = vst.msk [vmem:[#allocation3] sm:$0xff] %vm171, -inf
        $region32: #{tpu_custom_call.1} parent=27 // pred_fallthru
          _
        %v174 = vld [vmem:[#allocation2] sm:$0xff]
        %v175 = vadd.f32 %v166, 0.0
        %v176 = vadd.f32 %v174, %v175
        %vm177 = vcmask 523264
        %178 = vst.msk [vmem:[#allocation2] sm:$0xff] %vm177, %v176
        %v179 = vld [vmem:[#allocation3] sm:$0xff]
        %v180 = vmax.f32 %v179, %v166
        %181 = vst.msk [vmem:[#allocation3] sm:$0xff] %vm177, %v180
        %p182 = scmp.eq.s32.totalorder %s21, 3
        // Predicated region
        $region33: #{tpu_custom_call.1} parent=27 // pred_check
          %p183 = pneg %p182
        $region34: #{tpu_custom_call.1} parent=27 // pred_check_branch
          %185 = sbr.rel (%p183) target = $region36
        $region35: #{tpu_custom_call.1} parent=27 // pred_region
          %v186 = vld [vmem:[#allocation2] sm:$0xff]
          %v187 = vld [vmem:[#allocation3] sm:$0xff]
          %189 = vrot.lane.b32.xlu0 %v187, 64
          %v190 = vpop.permute.xlu0 %189
          %v192 = vsel %vm177, %v186, %v190
          %193 = vst [vmem:[#allocation4] sm:$0x7] 0.0
          %194 = vst [vmem:[#allocation4 + $0xb] sm:$0x7] 0.0
          %195 = vst [vmem:[#allocation4 + $0x3] sm:$0xff] %v192
          %v196 = vld [vmem:[#allocation4] sm:$0xff]
          %v197 = vpack.c.bf16 %v196, %v196
          %v198 = vld [vmem:[%s1] sm:$0xf]
          %v199 = vld [vmem:[%s1 + $0x4] sm:$0xf]
          %v200 = vld [vmem:[%s1 + $0x8] sm:$0xf]
          %v201 = vld [vmem:[%s1 + $0xc] sm:$0xf]
          %v202 = vld [vmem:[%s1 + $0x10] sm:$0xf]
          %v203 = vld [vmem:[%s1 + $0x14] sm:$0xf]
          %v204 = vld [vmem:[%s1 + $0x18] sm:$0xf]
          %v205 = vld [vmem:[%s1 + $0x1c] sm:$0xf]
          %v206 = vld [vmem:[%s1 + $0x20] sm:$0xf]
          %v207 = vld [vmem:[%s1 + $0x24] sm:$0xf]
          %v208 = vld [vmem:[%s1 + $0x28] sm:$0xf]
          %v209 = vld [vmem:[%s1 + $0x2c] sm:$0xf]
          %v210 = vld [vmem:[%s1 + $0x30] sm:$0xf]
          %v211 = vld [vmem:[%s1 + $0x34] sm:$0xf]
          %v212 = vld [vmem:[%s1 + $0x38] sm:$0xf]
          %v213 = vld [vmem:[%s1 + $0x3c] sm:$0xf]
          %v214 = vld [vmem:[#allocation4 + $0x1] sm:$0xff]
          %v215 = vpack.c.bf16 %v214, %v214
          %s216 = scalar_lea.vmem %s1, 64
          %v217 = vld [vmem:[%s216] sm:$0xf]
          %v218 = vld [vmem:[%s216 + $0x4] sm:$0xf]
          %v219 = vld [vmem:[%s216 + $0x8] sm:$0xf]
          %v220 = vld [vmem:[%s216 + $0xc] sm:$0xf]
          %v221 = vld [vmem:[%s216 + $0x10] sm:$0xf]
          %v222 = vld [vmem:[%s216 + $0x14] sm:$0xf]
          %v223 = vld [vmem:[%s216 + $0x18] sm:$0xf]
          %v224 = vld [vmem:[%s216 + $0x1c] sm:$0xf]
          %v225 = vld [vmem:[%s216 + $0x20] sm:$0xf]
          %v226 = vld [vmem:[%s216 + $0x24] sm:$0xf]
          %v227 = vld [vmem:[%s216 + $0x28] sm:$0xf]
          %v228 = vld [vmem:[%s216 + $0x2c] sm:$0xf]
          %v229 = vld [vmem:[%s216 + $0x30] sm:$0xf]
          %v230 = vld [vmem:[%s216 + $0x34] sm:$0xf]
          %v231 = vld [vmem:[%s216 + $0x38] sm:$0xf]
          %v232 = vld [vmem:[%s216 + $0x3c] sm:$0xf]
          %v249 = vunpack.c.l.b16 %v217
          %v250 = vunpack.c.l.b16 %v218
          %v251 = vunpack.c.l.b16 %v219
          %v252 = vunpack.c.l.b16 %v220
          %v253 = vunpack.c.l.b16 %v221
          %v254 = vunpack.c.l.b16 %v222
          %v255 = vunpack.c.l.b16 %v223
          %v256 = vunpack.c.l.b16 %v224
          %v257 = vunpack.c.l.b16 %v225
          %v258 = vunpack.c.l.b16 %v226
          %v259 = vunpack.c.l.b16 %v227
          %v260 = vunpack.c.l.b16 %v228
          %v261 = vunpack.c.l.b16 %v229
          %v262 = vunpack.c.l.b16 %v230
          %v263 = vunpack.c.l.b16 %v231
          %v264 = vunpack.c.l.b16 %v232
          %v265 = vpack.c.b16 %v250, %v249
          %v266 = vpack.c.b16 %v252, %v251
          %v267 = vpack.c.b16 %v254, %v253
          %v268 = vpack.c.b16 %v256, %v255
          %v269 = vpack.c.b16 %v258, %v257
          %v270 = vpack.c.b16 %v260, %v259
          %v271 = vpack.c.b16 %v262, %v261
          %v272 = vpack.c.b16 %v264, %v263
          %281 = vmatprep.subr.bf16.mxu0 0
          %282 = vmatpush1.bf16.msra.mxu0 %v272
          %283 = vmatprep.subr.bf16.mxu0 0
          %284 = vmatpush1.bf16.msra.mxu0 %v271
          %285 = vmatprep.subr.bf16.mxu0 0
          %286 = vmatpush1.bf16.msra.mxu0 %v270
          %287 = vmatprep.subr.bf16.mxu0 0
          %288 = vmatpush1.bf16.msra.mxu0 %v269
          %289 = vmatprep.subr.bf16.mxu0 0
          %290 = vmatpush1.bf16.msra.mxu0 %v268
          %291 = vmatprep.subr.bf16.mxu0 0
          %292 = vmatpush1.bf16.msra.mxu0 %v267
          %293 = vmatprep.subr.bf16.mxu0 0
          %294 = vmatpush1.bf16.msra.mxu0 %v266
          %295 = vmatprep.subr.bf16.mxu0 0
          %296 = vmatpush1.bf16.msra.mxu0 %v265
          %297 = vmatprep.subr.bf16.mxu0 0
          %298 = vmatpush2.bf16.msra.mxu0 0
          %299 = vmatprep.subr.bf16.mxu0 0
          %300 = vmatpush2.bf16.msra.mxu0 0
          %301 = vmatprep.subr.bf16.mxu0 0
          %302 = vmatpush2.bf16.msra.mxu0 0
          %303 = vmatprep.subr.bf16.mxu0 0
          %304 = vmatpush2.bf16.msra.mxu0 0
          %305 = vmatprep.subr.bf16.mxu0 0
          %306 = vmatpush2.bf16.msra.mxu0 0
          %307 = vmatprep.subr.bf16.mxu0 0
          %308 = vmatpush2.bf16.msra.mxu0 0
          %309 = vmatprep.subr.bf16.mxu0 0
          %310 = vmatpush2.bf16.msra.mxu0 0
          %311 = vmatprep.subr.bf16.mxu0 0
          %312 = vmatpush2.bf16.msra.mxu0 0
          %313 = vmatprep.mubr.bf16.mxu0 0
          %314 = vmatmul.mubr.bf16.gmra.mxu0 %v215
          %v315 = vpop.f32.mrf.mxu0
          %v316 = vadd.f32 0.0, %v315
          %v317 = vpop.f32.mrf.mxu0
          %v318 = vpop.f32.mrf.mxu0
          %v319 = vpop.f32.mrf.mxu0
          %320 = vdwg.mxu0
          %v337 = vunpack.c.l.b16 %v198
          %v338 = vunpack.c.l.b16 %v199
          %v339 = vunpack.c.l.b16 %v200
          %v340 = vunpack.c.l.b16 %v201
          %v341 = vunpack.c.l.b16 %v202
          %v342 = vunpack.c.l.b16 %v203
          %v343 = vunpack.c.l.b16 %v204
          %v344 = vunpack.c.l.b16 %v205
          %v345 = vunpack.c.l.b16 %v206
          %v346 = vunpack.c.l.b16 %v207
          %v347 = vunpack.c.l.b16 %v208
          %v348 = vunpack.c.l.b16 %v209
          %v349 = vunpack.c.l.b16 %v210
          %v350 = vunpack.c.l.b16 %v211
          %v351 = vunpack.c.l.b16 %v212
          %v352 = vunpack.c.l.b16 %v213
          %v353 = vpack.c.b16 %v338, %v337
          %v354 = vpack.c.b16 %v340, %v339
          %v355 = vpack.c.b16 %v342, %v341
          %v356 = vpack.c.b16 %v344, %v343
          %v357 = vpack.c.b16 %v346, %v345
          %v358 = vpack.c.b16 %v348, %v347
          %v359 = vpack.c.b16 %v350, %v349
          %v360 = vpack.c.b16 %v352, %v351
          %369 = vmatprep.subr.bf16.mxu0 0
          %370 = vmatpush1.bf16.msra.mxu0 %v360
          %371 = vmatprep.subr.bf16.mxu0 0
          %372 = vmatpush1.bf16.msra.mxu0 %v359
          %373 = vmatprep.subr.bf16.mxu0 0
          %374 = vmatpush1.bf16.msra.mxu0 %v358
          %375 = vmatprep.subr.bf16.mxu0 0
          %376 = vmatpush1.bf16.msra.mxu0 %v357
          %377 = vmatprep.subr.bf16.mxu0 0
          %378 = vmatpush1.bf16.msra.mxu0 %v356
          %379 = vmatprep.subr.bf16.mxu0 0
          %380 = vmatpush1.bf16.msra.mxu0 %v355
          %381 = vmatprep.subr.bf16.mxu0 0
          %382 = vmatpush1.bf16.msra.mxu0 %v354
          %383 = vmatprep.subr.bf16.mxu0 0
          %384 = vmatpush1.bf16.msra.mxu0 %v353
          %385 = vmatprep.subr.bf16.mxu0 0
          %386 = vmatpush2.bf16.msra.mxu0 0
          %387 = vmatprep.subr.bf16.mxu0 0
          %388 = vmatpush2.bf16.msra.mxu0 0
          %389 = vmatprep.subr.bf16.mxu0 0
          %390 = vmatpush2.bf16.msra.mxu0 0
          %391 = vmatprep.subr.bf16.mxu0 0
          %392 = vmatpush2.bf16.msra.mxu0 0
          %393 = vmatprep.subr.bf16.mxu0 0
          %394 = vmatpush2.bf16.msra.mxu0 0
          %395 = vmatprep.subr.bf16.mxu0 0
          %396 = vmatpush2.bf16.msra.mxu0 0
          %397 = vmatprep.subr.bf16.mxu0 0
          %398 = vmatpush2.bf16.msra.mxu0 0
          %399 = vmatprep.subr.bf16.mxu0 0
          %400 = vmatpush2.bf16.msra.mxu0 0
          %401 = vmatprep.mubr.bf16.mxu0 0
          %402 = vmatmul.mubr.bf16.gmra.mxu0 %v197
          %v403 = vpop.f32.mrf.mxu0
          %v404 = vadd.f32 %v316, %v403
          %v405 = vpop.f32.mrf.mxu0
          %v406 = vpop.f32.mrf.mxu0
          %v407 = vpop.f32.mrf.mxu0
          %408 = vdwg.mxu0
          %v409 = vld [vmem:[#allocation4 + $0x2] sm:$0xff]
          %v410 = vpack.c.bf16 %v409, %v409
          %s411 = scalar_lea.vmem %s1, 128
          %v412 = vld [vmem:[%s411] sm:$0xf]
          %v413 = vld [vmem:[%s411 + $0x4] sm:$0xf]
          %v414 = vld [vmem:[%s411 + $0x8] sm:$0xf]
          %v415 = vld [vmem:[%s411 + $0xc] sm:$0xf]
          %v416 = vld [vmem:[%s411 + $0x10] sm:$0xf]
          %v417 = vld [vmem:[%s411 + $0x14] sm:$0xf]
          %v418 = vld [vmem:[%s411 + $0x18] sm:$0xf]
          %v419 = vld [vmem:[%s411 + $0x1c] sm:$0xf]
          %v420 = vld [vmem:[%s411 + $0x20] sm:$0xf]
          %v421 = vld [vmem:[%s411 + $0x24] sm:$0xf]
          %v422 = vld [vmem:[%s411 + $0x28] sm:$0xf]
          %v423 = vld [vmem:[%s411 + $0x2c] sm:$0xf]
          %v424 = vld [vmem:[%s411 + $0x30] sm:$0xf]
          %v425 = vld [vmem:[%s411 + $0x34] sm:$0xf]
          %v426 = vld [vmem:[%s411 + $0x38] sm:$0xf]
          %v427 = vld [vmem:[%s411 + $0x3c] sm:$0xf]
          %v444 = vunpack.c.l.b16 %v412
          %v445 = vunpack.c.l.b16 %v413
          %v446 = vunpack.c.l.b16 %v414
          %v447 = vunpack.c.l.b16 %v415
          %v448 = vunpack.c.l.b16 %v416
          %v449 = vunpack.c.l.b16 %v417
          %v450 = vunpack.c.l.b16 %v418
          %v451 = vunpack.c.l.b16 %v419
          %v452 = vunpack.c.l.b16 %v420
          %v453 = vunpack.c.l.b16 %v421
          %v454 = vunpack.c.l.b16 %v422
          %v455 = vunpack.c.l.b16 %v423
          %v456 = vunpack.c.l.b16 %v424
          %v457 = vunpack.c.l.b16 %v425
          %v458 = vunpack.c.l.b16 %v426
          %v459 = vunpack.c.l.b16 %v427
          %v460 = vpack.c.b16 %v445, %v444
          %v461 = vpack.c.b16 %v447, %v446
          %v462 = vpack.c.b16 %v449, %v448
          %v463 = vpack.c.b16 %v451, %v450
          %v464 = vpack.c.b16 %v453, %v452
          %v465 = vpack.c.b16 %v455, %v454
          %v466 = vpack.c.b16 %v457, %v456
          %v467 = vpack.c.b16 %v459, %v458
          %476 = vmatprep.subr.bf16.mxu0 0
          %477 = vmatpush1.bf16.msra.mxu0 %v467
          %478 = vmatprep.subr.bf16.mxu0 0
          %479 = vmatpush1.bf16.msra.mxu0 %v466
          %480 = vmatprep.subr.bf16.mxu0 0
          %481 = vmatpush1.bf16.msra.mxu0 %v465
          %482 = vmatprep.subr.bf16.mxu0 0
          %483 = vmatpush1.bf16.msra.mxu0 %v464
          %484 = vmatprep.subr.bf16.mxu0 0
          %485 = vmatpush1.bf16.msra.mxu0 %v463
          %486 = vmatprep.subr.bf16.mxu0 0
          %487 = vmatpush1.bf16.msra.mxu0 %v462
          %488 = vmatprep.subr.bf16.mxu0 0
          %489 = vmatpush1.bf16.msra.mxu0 %v461
          %490 = vmatprep.subr.bf16.mxu0 0
          %491 = vmatpush1.bf16.msra.mxu0 %v460
          %492 = vmatprep.subr.bf16.mxu0 0
          %493 = vmatpush2.bf16.msra.mxu0 0
          %494 = vmatprep.subr.bf16.mxu0 0
          %495 = vmatpush2.bf16.msra.mxu0 0
          %496 = vmatprep.subr.bf16.mxu0 0
          %497 = vmatpush2.bf16.msra.mxu0 0
          %498 = vmatprep.subr.bf16.mxu0 0
          %499 = vmatpush2.bf16.msra.mxu0 0
          %500 = vmatprep.subr.bf16.mxu0 0
          %501 = vmatpush2.bf16.msra.mxu0 0
          %502 = vmatprep.subr.bf16.mxu0 0
          %503 = vmatpush2.bf16.msra.mxu0 0
          %504 = vmatprep.subr.bf16.mxu0 0
          %505 = vmatpush2.bf16.msra.mxu0 0
          %506 = vmatprep.subr.bf16.mxu0 0
          %507 = vmatpush2.bf16.msra.mxu0 0
          %508 = vmatprep.mubr.bf16.mxu0 0
          %509 = vmatmul.mubr.bf16.gmra.mxu0 %v410
          %v510 = vpop.f32.mrf.mxu0
          %v511 = vadd.f32 0.0, %v510
          %v512 = vpop.f32.mrf.mxu0
          %v513 = vpop.f32.mrf.mxu0
          %v514 = vpop.f32.mrf.mxu0
          %515 = vdwg.mxu0
          %v516 = vadd.f32 %v404, %v511
          %v517 = vld [vmem:[#allocation4 + $0x3] sm:$0xff]
          %v518 = vpack.c.bf16 %v517, %v517
          %s519 = scalar_lea.vmem %s1, 192
          %v520 = vld [vmem:[%s519] sm:$0xf]
          %v521 = vld [vmem:[%s519 + $0x4] sm:$0xf]
          %v522 = vld [vmem:[%s519 + $0x8] sm:$0xf]
          %v523 = vld [vmem:[%s519 + $0xc] sm:$0xf]
          %v524 = vld [vmem:[%s519 + $0x10] sm:$0xf]
          %v525 = vld [vmem:[%s519 + $0x14] sm:$0xf]
          %v526 = vld [vmem:[%s519 + $0x18] sm:$0xf]
          %v527 = vld [vmem:[%s519 + $0x1c] sm:$0xf]
          %v528 = vld [vmem:[%s519 + $0x20] sm:$0xf]
          %v529 = vld [vmem:[%s519 + $0x24] sm:$0xf]
          %v530 = vld [vmem:[%s519 + $0x28] sm:$0xf]
          %v531 = vld [vmem:[%s519 + $0x2c] sm:$0xf]
          %v532 = vld [vmem:[%s519 + $0x30] sm:$0xf]
          %v533 = vld [vmem:[%s519 + $0x34] sm:$0xf]
          %v534 = vld [vmem:[%s519 + $0x38] sm:$0xf]
          %v535 = vld [vmem:[%s519 + $0x3c] sm:$0xf]
          %v552 = vunpack.c.l.b16 %v520
          %v553 = vunpack.c.l.b16 %v521
          %v554 = vunpack.c.l.b16 %v522
          %v555 = vunpack.c.l.b16 %v523
          %v556 = vunpack.c.l.b16 %v524
          %v557 = vunpack.c.l.b16 %v525
          %v558 = vunpack.c.l.b16 %v526
          %v559 = vunpack.c.l.b16 %v527
          %v560 = vunpack.c.l.b16 %v528
          %v561 = vunpack.c.l.b16 %v529
          %v562 = vunpack.c.l.b16 %v530
          %v563 = vunpack.c.l.b16 %v531
          %v564 = vunpack.c.l.b16 %v532
          %v565 = vunpack.c.l.b16 %v533
          %v566 = vunpack.c.l.b16 %v534
          %v567 = vunpack.c.l.b16 %v535
          %v568 = vpack.c.b16 %v553, %v552
          %v569 = vpack.c.b16 %v555, %v554
          %v570 = vpack.c.b16 %v557, %v556
          %v571 = vpack.c.b16 %v559, %v558
          %v572 = vpack.c.b16 %v561, %v560
          %v573 = vpack.c.b16 %v563, %v562
          %v574 = vpack.c.b16 %v565, %v564
          %v575 = vpack.c.b16 %v567, %v566
          %584 = vmatprep.subr.bf16.mxu0 0
          %585 = vmatpush1.bf16.msra.mxu0 %v575
          %586 = vmatprep.subr.bf16.mxu0 0
          %587 = vmatpush1.bf16.msra.mxu0 %v574
          %588 = vmatprep.subr.bf16.mxu0 0
          %589 = vmatpush1.bf16.msra.mxu0 %v573
          %590 = vmatprep.subr.bf16.mxu0 0
          %591 = vmatpush1.bf16.msra.mxu0 %v572
          %592 = vmatprep.subr.bf16.mxu0 0
          %593 = vmatpush1.bf16.msra.mxu0 %v571
          %594 = vmatprep.subr.bf16.mxu0 0
          %595 = vmatpush1.bf16.msra.mxu0 %v570
          %596 = vmatprep.subr.bf16.mxu0 0
          %597 = vmatpush1.bf16.msra.mxu0 %v569
          %598 = vmatprep.subr.bf16.mxu0 0
          %599 = vmatpush1.bf16.msra.mxu0 %v568
          %600 = vmatprep.subr.bf16.mxu0 0
          %601 = vmatpush2.bf16.msra.mxu0 0
          %602 = vmatprep.subr.bf16.mxu0 0
          %603 = vmatpush2.bf16.msra.mxu0 0
          %604 = vmatprep.subr.bf16.mxu0 0
          %605 = vmatpush2.bf16.msra.mxu0 0
          %606 = vmatprep.subr.bf16.mxu0 0
          %607 = vmatpush2.bf16.msra.mxu0 0
          %608 = vmatprep.subr.bf16.mxu0 0
          %609 = vmatpush2.bf16.msra.mxu0 0
          %610 = vmatprep.subr.bf16.mxu0 0
          %611 = vmatpush2.bf16.msra.mxu0 0
          %612 = vmatprep.subr.bf16.mxu0 0
          %613 = vmatpush2.bf16.msra.mxu0 0
          %614 = vmatprep.subr.bf16.mxu0 0
          %615 = vmatpush2.bf16.msra.mxu0 0
          %616 = vmatprep.mubr.bf16.mxu0 0
          %617 = vmatmul.mubr.bf16.gmra.mxu0 %v518
          %v618 = vpop.f32.mrf.mxu0
          %v619 = vadd.f32 0.0, %v618
          %v620 = vpop.f32.mrf.mxu0
          %v621 = vpop.f32.mrf.mxu0
          %v622 = vpop.f32.mrf.mxu0
          %623 = vdwg.mxu0
          %v624 = vadd.f32 %v516, %v619
          %v625 = vld [vmem:[#allocation4 + $0x4] sm:$0xff]
          %v626 = vpack.c.bf16 %v625, %v625
          %s627 = scalar_lea.vmem %s1, 256
          %v628 = vld [vmem:[%s627] sm:$0xf]
          %v629 = vld [vmem:[%s627 + $0x4] sm:$0xf]
          %v630 = vld [vmem:[%s627 + $0x8] sm:$0xf]
          %v631 = vld [vmem:[%s627 + $0xc] sm:$0xf]
          %v632 = vld [vmem:[%s627 + $0x10] sm:$0xf]
          %v633 = vld [vmem:[%s627 + $0x14] sm:$0xf]
          %v634 = vld [vmem:[%s627 + $0x18] sm:$0xf]
          %v635 = vld [vmem:[%s627 + $0x1c] sm:$0xf]
          %v636 = vld [vmem:[%s627 + $0x20] sm:$0xf]
          %v637 = vld [vmem:[%s627 + $0x24] sm:$0xf]
          %v638 = vld [vmem:[%s627 + $0x28] sm:$0xf]
          %v639 = vld [vmem:[%s627 + $0x2c] sm:$0xf]
          %v640 = vld [vmem:[%s627 + $0x30] sm:$0xf]
          %v641 = vld [vmem:[%s627 + $0x34] sm:$0xf]
          %v642 = vld [vmem:[%s627 + $0x38] sm:$0xf]
          %v643 = vld [vmem:[%s627 + $0x3c] sm:$0xf]
          %v660 = vunpack.c.l.b16 %v628
          %v661 = vunpack.c.l.b16 %v629
          %v662 = vunpack.c.l.b16 %v630
          %v663 = vunpack.c.l.b16 %v631
          %v664 = vunpack.c.l.b16 %v632
          %v665 = vunpack.c.l.b16 %v633
          %v666 = vunpack.c.l.b16 %v634
          %v667 = vunpack.c.l.b16 %v635
          %v668 = vunpack.c.l.b16 %v636
          %v669 = vunpack.c.l.b16 %v637
          %v670 = vunpack.c.l.b16 %v638
          %v671 = vunpack.c.l.b16 %v639
          %v672 = vunpack.c.l.b16 %v640
          %v673 = vunpack.c.l.b16 %v641
          %v674 = vunpack.c.l.b16 %v642
          %v675 = vunpack.c.l.b16 %v643
          %v676 = vpack.c.b16 %v661, %v660
          %v677 = vpack.c.b16 %v663, %v662
          %v678 = vpack.c.b16 %v665, %v664
          %v679 = vpack.c.b16 %v667, %v666
          %v680 = vpack.c.b16 %v669, %v668
          %v681 = vpack.c.b16 %v671, %v670
          %v682 = vpack.c.b16 %v673, %v672
          %v683 = vpack.c.b16 %v675, %v674
          %692 = vmatprep.subr.bf16.mxu0 0
          %693 = vmatpush1.bf16.msra.mxu0 %v683
          %694 = vmatprep.subr.bf16.mxu0 0
          %695 = vmatpush1.bf16.msra.mxu0 %v682
          %696 = vmatprep.subr.bf16.mxu0 0
          %697 = vmatpush1.bf16.msra.mxu0 %v681
          %698 = vmatprep.subr.bf16.mxu0 0
          %699 = vmatpush1.bf16.msra.mxu0 %v680
          %700 = vmatprep.subr.bf16.mxu0 0
          %701 = vmatpush1.bf16.msra.mxu0 %v679
          %702 = vmatprep.subr.bf16.mxu0 0
          %703 = vmatpush1.bf16.msra.mxu0 %v678
          %704 = vmatprep.subr.bf16.mxu0 0
          %705 = vmatpush1.bf16.msra.mxu0 %v677
          %706 = vmatprep.subr.bf16.mxu0 0
          %707 = vmatpush1.bf16.msra.mxu0 %v676
          %708 = vmatprep.subr.bf16.mxu0 0
          %709 = vmatpush2.bf16.msra.mxu0 0
          %710 = vmatprep.subr.bf16.mxu0 0
          %711 = vmatpush2.bf16.msra.mxu0 0
          %712 = vmatprep.subr.bf16.mxu0 0
          %713 = vmatpush2.bf16.msra.mxu0 0
          %714 = vmatprep.subr.bf16.mxu0 0
          %715 = vmatpush2.bf16.msra.mxu0 0
          %716 = vmatprep.subr.bf16.mxu0 0
          %717 = vmatpush2.bf16.msra.mxu0 0
          %718 = vmatprep.subr.bf16.mxu0 0
          %719 = vmatpush2.bf16.msra.mxu0 0
          %720 = vmatprep.subr.bf16.mxu0 0
          %721 = vmatpush2.bf16.msra.mxu0 0
          %722 = vmatprep.subr.bf16.mxu0 0
          %723 = vmatpush2.bf16.msra.mxu0 0
          %724 = vmatprep.mubr.bf16.mxu0 0
          %725 = vmatmul.mubr.bf16.gmra.mxu0 %v626
          %v726 = vpop.f32.mrf.mxu0
          %v727 = vadd.f32 0.0, %v726
          %v728 = vpop.f32.mrf.mxu0
          %v729 = vpop.f32.mrf.mxu0
          %v730 = vpop.f32.mrf.mxu0
          %731 = vdwg.mxu0
          %v732 = vadd.f32 %v624, %v727
          %v733 = vld [vmem:[#allocation4 + $0x5] sm:$0xff]
          %v734 = vpack.c.bf16 %v733, %v733
          %s735 = scalar_lea.vmem %s1, 320
          %v736 = vld [vmem:[%s735] sm:$0xf]
          %v737 = vld [vmem:[%s735 + $0x4] sm:$0xf]
          %v738 = vld [vmem:[%s735 + $0x8] sm:$0xf]
          %v739 = vld [vmem:[%s735 + $0xc] sm:$0xf]
          %v740 = vld [vmem:[%s735 + $0x10] sm:$0xf]
          %v741 = vld [vmem:[%s735 + $0x14] sm:$0xf]
          %v742 = vld [vmem:[%s735 + $0x18] sm:$0xf]
          %v743 = vld [vmem:[%s735 + $0x1c] sm:$0xf]
          %v744 = vld [vmem:[%s735 + $0x20] sm:$0xf]
          %v745 = vld [vmem:[%s735 + $0x24] sm:$0xf]
          %v746 = vld [vmem:[%s735 + $0x28] sm:$0xf]
          %v747 = vld [vmem:[%s735 + $0x2c] sm:$0xf]
          %v748 = vld [vmem:[%s735 + $0x30] sm:$0xf]
          %v749 = vld [vmem:[%s735 + $0x34] sm:$0xf]
          %v750 = vld [vmem:[%s735 + $0x38] sm:$0xf]
          %v751 = vld [vmem:[%s735 + $0x3c] sm:$0xf]
          %v768 = vunpack.c.l.b16 %v736
          %v769 = vunpack.c.l.b16 %v737
          %v770 = vunpack.c.l.b16 %v738
          %v771 = vunpack.c.l.b16 %v739
          %v772 = vunpack.c.l.b16 %v740
          %v773 = vunpack.c.l.b16 %v741
          %v774 = vunpack.c.l.b16 %v742
          %v775 = vunpack.c.l.b16 %v743
          %v776 = vunpack.c.l.b16 %v744
          %v777 = vunpack.c.l.b16 %v745
          %v778 = vunpack.c.l.b16 %v746
          %v779 = vunpack.c.l.b16 %v747
          %v780 = vunpack.c.l.b16 %v748
          %v781 = vunpack.c.l.b16 %v749
          %v782 = vunpack.c.l.b16 %v750
          %v783 = vunpack.c.l.b16 %v751
          %v784 = vpack.c.b16 %v769, %v768
          %v785 = vpack.c.b16 %v771, %v770
          %v786 = vpack.c.b16 %v773, %v772
          %v787 = vpack.c.b16 %v775, %v774
          %v788 = vpack.c.b16 %v777, %v776
          %v789 = vpack.c.b16 %v779, %v778
          %v790 = vpack.c.b16 %v781, %v780
          %v791 = vpack.c.b16 %v783, %v782
          %800 = vmatprep.subr.bf16.mxu0 0
          %801 = vmatpush1.bf16.msra.mxu0 %v791
          %802 = vmatprep.subr.bf16.mxu0 0
          %803 = vmatpush1.bf16.msra.mxu0 %v790
          %804 = vmatprep.subr.bf16.mxu0 0
          %805 = vmatpush1.bf16.msra.mxu0 %v789
          %806 = vmatprep.subr.bf16.mxu0 0
          %807 = vmatpush1.bf16.msra.mxu0 %v788
          %808 = vmatprep.subr.bf16.mxu0 0
          %809 = vmatpush1.bf16.msra.mxu0 %v787
          %810 = vmatprep.subr.bf16.mxu0 0
          %811 = vmatpush1.bf16.msra.mxu0 %v786
          %812 = vmatprep.subr.bf16.mxu0 0
          %813 = vmatpush1.bf16.msra.mxu0 %v785
          %814 = vmatprep.subr.bf16.mxu0 0
          %815 = vmatpush1.bf16.msra.mxu0 %v784
          %816 = vmatprep.subr.bf16.mxu0 0
          %817 = vmatpush2.bf16.msra.mxu0 0
          %818 = vmatprep.subr.bf16.mxu0 0
          %819 = vmatpush2.bf16.msra.mxu0 0
          %820 = vmatprep.subr.bf16.mxu0 0
          %821 = vmatpush2.bf16.msra.mxu0 0
          %822 = vmatprep.subr.bf16.mxu0 0
          %823 = vmatpush2.bf16.msra.mxu0 0
          %824 = vmatprep.subr.bf16.mxu0 0
          %825 = vmatpush2.bf16.msra.mxu0 0
          %826 = vmatprep.subr.bf16.mxu0 0
          %827 = vmatpush2.bf16.msra.mxu0 0
          %828 = vmatprep.subr.bf16.mxu0 0
          %829 = vmatpush2.bf16.msra.mxu0 0
          %830 = vmatprep.subr.bf16.mxu0 0
          %831 = vmatpush2.bf16.msra.mxu0 0
          %832 = vmatprep.mubr.bf16.mxu0 0
          %833 = vmatmul.mubr.bf16.gmra.mxu0 %v734
          %v834 = vpop.f32.mrf.mxu0
          %v835 = vadd.f32 0.0, %v834
          %v836 = vpop.f32.mrf.mxu0
          %v837 = vpop.f32.mrf.mxu0
          %v838 = vpop.f32.mrf.mxu0
          %839 = vdwg.mxu0
          %v840 = vadd.f32 %v732, %v835
          %v841 = vld [vmem:[#allocation4 + $0x6] sm:$0xff]
          %v842 = vpack.c.bf16 %v841, %v841
          %s843 = scalar_lea.vmem %s1, 384
          %v844 = vld [vmem:[%s843] sm:$0xf]
          %v845 = vld [vmem:[%s843 + $0x4] sm:$0xf]
          %v846 = vld [vmem:[%s843 + $0x8] sm:$0xf]
          %v847 = vld [vmem:[%s843 + $0xc] sm:$0xf]
          %v848 = vld [vmem:[%s843 + $0x10] sm:$0xf]
          %v849 = vld [vmem:[%s843 + $0x14] sm:$0xf]
          %v850 = vld [vmem:[%s843 + $0x18] sm:$0xf]
          %v851 = vld [vmem:[%s843 + $0x1c] sm:$0xf]
          %v852 = vld [vmem:[%s843 + $0x20] sm:$0xf]
          %v853 = vld [vmem:[%s843 + $0x24] sm:$0xf]
          %v854 = vld [vmem:[%s843 + $0x28] sm:$0xf]
          %v855 = vld [vmem:[%s843 + $0x2c] sm:$0xf]
          %v856 = vld [vmem:[%s843 + $0x30] sm:$0xf]
          %v857 = vld [vmem:[%s843 + $0x34] sm:$0xf]
          %v858 = vld [vmem:[%s843 + $0x38] sm:$0xf]
          %v859 = vld [vmem:[%s843 + $0x3c] sm:$0xf]
          %v876 = vunpack.c.l.b16 %v844
          %v877 = vunpack.c.l.b16 %v845
          %v878 = vunpack.c.l.b16 %v846
          %v879 = vunpack.c.l.b16 %v847
          %v880 = vunpack.c.l.b16 %v848
          %v881 = vunpack.c.l.b16 %v849
          %v882 = vunpack.c.l.b16 %v850
          %v883 = vunpack.c.l.b16 %v851
          %v884 = vunpack.c.l.b16 %v852
          %v885 = vunpack.c.l.b16 %v853
          %v886 = vunpack.c.l.b16 %v854
          %v887 = vunpack.c.l.b16 %v855
          %v888 = vunpack.c.l.b16 %v856
          %v889 = vunpack.c.l.b16 %v857
          %v890 = vunpack.c.l.b16 %v858
          %v891 = vunpack.c.l.b16 %v859
          %v892 = vpack.c.b16 %v877, %v876
          %v893 = vpack.c.b16 %v879, %v878
          %v894 = vpack.c.b16 %v881, %v880
          %v895 = vpack.c.b16 %v883, %v882
          %v896 = vpack.c.b16 %v885, %v884
          %v897 = vpack.c.b16 %v887, %v886
          %v898 = vpack.c.b16 %v889, %v888
          %v899 = vpack.c.b16 %v891, %v890
          %908 = vmatprep.subr.bf16.mxu0 0
          %909 = vmatpush1.bf16.msra.mxu0 %v899
          %910 = vmatprep.subr.bf16.mxu0 0
          %911 = vmatpush1.bf16.msra.mxu0 %v898
          %912 = vmatprep.subr.bf16.mxu0 0
          %913 = vmatpush1.bf16.msra.mxu0 %v897
          %914 = vmatprep.subr.bf16.mxu0 0
          %915 = vmatpush1.bf16.msra.mxu0 %v896
          %916 = vmatprep.subr.bf16.mxu0 0
          %917 = vmatpush1.bf16.msra.mxu0 %v895
          %918 = vmatprep.subr.bf16.mxu0 0
          %919 = vmatpush1.bf16.msra.mxu0 %v894
          %920 = vmatprep.subr.bf16.mxu0 0
          %921 = vmatpush1.bf16.msra.mxu0 %v893
          %922 = vmatprep.subr.bf16.mxu0 0
          %923 = vmatpush1.bf16.msra.mxu0 %v892
          %924 = vmatprep.subr.bf16.mxu0 0
          %925 = vmatpush2.bf16.msra.mxu0 0
          %926 = vmatprep.subr.bf16.mxu0 0
          %927 = vmatpush2.bf16.msra.mxu0 0
          %928 = vmatprep.subr.bf16.mxu0 0
          %929 = vmatpush2.bf16.msra.mxu0 0
          %930 = vmatprep.subr.bf16.mxu0 0
          %931 = vmatpush2.bf16.msra.mxu0 0
          %932 = vmatprep.subr.bf16.mxu0 0
          %933 = vmatpush2.bf16.msra.mxu0 0
          %934 = vmatprep.subr.bf16.mxu0 0
          %935 = vmatpush2.bf16.msra.mxu0 0
          %936 = vmatprep.subr.bf16.mxu0 0
          %937 = vmatpush2.bf16.msra.mxu0 0
          %938 = vmatprep.subr.bf16.mxu0 0
          %939 = vmatpush2.bf16.msra.mxu0 0
          %940 = vmatprep.mubr.bf16.mxu0 0
          %941 = vmatmul.mubr.bf16.gmra.mxu0 %v842
          %v942 = vpop.f32.mrf.mxu0
          %v943 = vadd.f32 0.0, %v942
          %v944 = vpop.f32.mrf.mxu0
          %v945 = vpop.f32.mrf.mxu0
          %v946 = vpop.f32.mrf.mxu0
          %947 = vdwg.mxu0
          %v948 = vadd.f32 %v840, %v943
          %v949 = vxor.u32 %v948, 2147483648
          %v950 = vmul.f32 %v949, 1.442695
          %v951 = vpow.pop %v950
          %v952 = vadd.f32 %v951, 1.0
          %v953 = vrcp.pop %v952
          %v954 = vmul.f32 1.0, %v953
          %955 = vst.msk [vmem:[%s156] sm:$0xff] %vm177, %v954
        $region36: #{tpu_custom_call.1} parent=27 // pred_fallthru
          _
        %s956 = sand.u32 %s85, 1
        %s957 = scalar_lea.sflag [#allocation6], %s956
        %s958 = sand.u32 %s85, 1
        %s959 = smul.addr %s958, 8
        %s960 = scalar_lea.vmem [#allocation5], %s959
        // Predicated region
        $region37: #{tpu_custom_call.1} parent=27 // pred_check
          %p961 = pneg %p95
        $region38: #{tpu_custom_call.1} parent=27 // pred_check_branch
          %963 = sbr.rel (%p961) target = $region40
        $region39: #{tpu_custom_call.1} parent=27 // pred_region
          %s965 = ssub.s32 128, 128
          %966 = vsyncadd %s957, %s965
          %s967 = smul.addr %s20, 128
          %s968 = scalar_lea.hbm %s2, %s967
          %s970 = sshll.u32 %s960, 4
          %s971 = int_to_ptr.vmem [resolvable:$true] %s970
          %973 = dma.vmem_to_hbm [thread:$0]  %s971, 128, %s968, %s957
        $region40: #{tpu_custom_call.1} parent=27 // pred_fallthru
          _
      $region28: #{tpu_custom_call.1} parent=5 // pred_fallthru
        _
      %p974 = scmp.le.s32.totalorder 2, %s11
      // Predicated region
      $region41: #{tpu_custom_call.1} parent=5 // pred_check
        %p975 = pneg %p974
      $region42: #{tpu_custom_call.1} parent=5 // pred_check_branch
        %977 = sbr.rel (%p975) target = $region44
      $region43: #{tpu_custom_call.1} parent=5 // pred_region
        %s978 = ssub.s32 %s11, 2
        // Predicated region
        $region45: #{tpu_custom_call.1} parent=43 // pred_check
          %p979 = pneg %p101
        $region46: #{tpu_custom_call.1} parent=43 // pred_check_branch
          %981 = sbr.rel (%p979) target = $region48
        $region47: #{tpu_custom_call.1} parent=43 // pred_region
          %s982 = sand.u32 %s86, 1
          %s983 = scalar_lea.sflag [#allocation6], %s982
          %s984 = sand.u32 %s86, 1
          %s985 = smul.addr %s984, 8
          %s986 = scalar_lea.vmem [#allocation5], %s985
          %987 = dma.done %s983, 128
        $region48: #{tpu_custom_call.1} parent=43 // pred_fallthru
          _
      $region44: #{tpu_custom_call.1} parent=5 // pred_fallthru
        _
    $region6: #{tpu_custom_call.1} parent=1 // loop_footer
      %s15 = sadd.s32 1, %s11
    $region7: #{tpu_custom_call.1} parent=1 // loop_footer_branch
      %10 = sbr.rel target = $region3
    $region8: #{tpu_custom_call.1} parent=1 // loop_exit
      _
    %988 = vsyncpa [#allocation6], 1
    %s989 = scalar_lea.sflag [#allocation6], 1
    %990 = vsyncpa %s989, 1

</llo_original>
